<compile_context>
chip_gen: v6e
topology: v6e:2x2x1
jax: 0.10.0
libtpu: 0.0.40
codegen_flags: <defaults>
</compile_context>

<pallas_src>
import functools

import jax
import jax.numpy as jnp
from jax.experimental import pallas as pl
from jax.experimental.pallas import tpu as pltpu


def _rmsnorm_kernel(x_ref, wp1_ref, o_ref, *, eps: float, inv_dim: float):
    # x_ref: (tm, D) tile; wp1_ref: (1, D) f32 == 1 + weight; o_ref: (tm, D).
    xf = x_ref[...].astype(jnp.float32)
    ssq = jnp.sum(xf * xf, axis=-1, keepdims=True)        # (tm, 1) row reduce (XLU)
    inv = jax.lax.rsqrt(ssq * inv_dim + eps)               # (tm, 1) rsqrt(mean+eps) (EUP)
    o_ref[...] = ((xf * inv) * wp1_ref[...]).astype(o_ref.dtype)


def _round_up(v: int, m: int) -> int:
    return ((v + m - 1) // m) * m


def _target_block_bytes() -> int:
    """Per-generation x-block size target (bigger on v7x to hide step overhead)."""
    try:
        kind = jax.devices()[0].device_kind.lower()
    except Exception:  # pragma: no cover - defensive; default is safe everywhere
        return 2 << 20
    if "v7" in kind or "tpu7" in kind:
        return 4 << 20          # v7x: ~3.2 TB/s HBM, 64 MiB VMEM
    return 2 << 20              # v5e / v6e: measured roofline plateau


def _pick_row_tile(rows: int, dim: int, itemsize: int, target_bytes: int) -> int:
    """Pick a dtype-aligned row tile: ~target-sized blocks, >=8 grid steps when
    there is enough work (>=4 per TC on v7x), never below ~512 KiB blocks,
    preferring an even number of grid steps."""
    if itemsize >= 4:
        align = 8            # f32: native (8, 128) sublane tiling
    elif itemsize == 2:
        align = 16           # bf16: one vreg holds [16, 128]
    else:
        align = 32           # int8 / fp8
    row_bytes = max(1, dim * itemsize)

    tile = max(align, (target_bytes // row_bytes) // align * align)
    floor = max(align, ((512 << 10) // row_bytes) // align * align)   # ~512 KiB

    # Prefer >= 8 grid steps so both v7x TensorCores run a steady-state pipeline.
    min_steps = 8
    if rows >= min_steps * floor:
        per_step = _round_up(pl.cdiv(rows, min_steps), align)
        tile = min(tile, max(floor, per_step))

    # Never exceed the (aligned-up) row count.
    tile = min(tile, _round_up(rows, align))

    # Prefer an even step count so the two TCs get balanced halves.
    steps = pl.cdiv(rows, tile)
    if steps > 1 and steps % 2 == 1:
        alt = _round_up(pl.cdiv(rows, steps + 1), align)
        if alt >= floor and pl.cdiv(rows, alt) % 2 == 0:
            tile = alt
    return tile


def _reference(x, weight, eps=1e-6):
    xf = x.astype(jnp.float32)
    y = xf * jax.lax.rsqrt(jnp.mean(xf * xf, axis=-1, keepdims=True) + eps)
    y = y * (1.0 + weight.astype(jnp.float32))
    return y.astype(x.dtype)


# Below this many input bytes, XLA's fused elementwise op beats the pallas_call
# fixed cost (grid setup + ~0.35 us step + un-overlapped in/out DMA).
_SMALL_INPUT_BYTES = 128 << 10


def gemma2_rmsnorm(x: jax.Array, weight: jax.Array, eps: float = 1e-6,
                   row_tile: int | None = None,
                   min_pallas_bytes: int = _SMALL_INPUT_BYTES) -> jax.Array:
    """x: (..., dim); weight: (dim,). Returns same shape/dtype as x."""
    orig_shape = x.shape
    dim = orig_shape[-1]
    rows = 1
    for s in orig_shape[:-1]:
        rows *= s
    itemsize = jnp.dtype(x.dtype).itemsize

    # Decode-sized inputs: plain fused XLA is faster than any kernel launch.
    if row_tile is None and rows * dim * itemsize < min_pallas_bytes:
        return _reference(x, weight, eps)

    x2d = x.reshape(rows, dim)
    # Hoisted weight prep: f32 (1 + w), computed once; constant block index ->
    # DMA'd once and VMEM-resident for the whole grid.
    wp1 = (1.0 + weight.astype(jnp.float32)).reshape(1, dim)

    if row_tile is None:
        row_tile = _pick_row_tile(rows, dim, itemsize, _target_block_bytes())

    grid = (pl.cdiv(rows, row_tile),)   # last block may be partial: OOB input rows
                                        # are harmless (per-row op), OOB output rows
                                        # are not written back.

    # VMEM budget from the actual footprint: double-buffered in/out blocks,
    # f32 temporaries inside the kernel, resident weight, plus slack.
    blk_bytes = row_tile * dim * itemsize
    f32_blk = row_tile * dim * 4
    footprint = 2 * blk_bytes + 2 * blk_bytes + 2 * f32_blk + dim * 4
    vmem_limit = int(min(48 << 20, max(16 << 20, footprint + (4 << 20))))

    out = pl.pallas_call(
        functools.partial(_rmsnorm_kernel, eps=float(eps),
                          inv_dim=1.0 / float(dim)),
        out_shape=jax.ShapeDtypeStruct((rows, dim), x.dtype),
        grid_spec=pltpu.PrefetchScalarGridSpec(
            num_scalar_prefetch=0,
            grid=grid,
            in_specs=[
                pl.BlockSpec((row_tile, dim), lambda i: (i, 0)),
                pl.BlockSpec((1, dim), lambda i: (0, 0)),
            ],
            # Full-width (128-multiple) last dim -> unmasked lane-dense stores.
            out_specs=pl.BlockSpec((row_tile, dim), lambda i: (i, 0)),
        ),
        compiler_params=pltpu.CompilerParams(
            dimension_semantics=("parallel",),
            vmem_limit_bytes=vmem_limit,
        ),
    )(x2d, wp1)

    return out.reshape(orig_shape)


if __name__ == "__main__":
    key = jax.random.PRNGKey(0)
    k1, k2, k3, k4, k5, k6 = jax.random.split(key, 6)

    # Case 1: tiny bf16 input (decode-sized) -> plain-JAX fallback path.
    x1 = jax.random.normal(k1, (2, 8, 256), dtype=jnp.bfloat16)
    w1 = 0.01 * jax.random.normal(k2, (256,), dtype=jnp.float32)
    o1 = jax.block_until_ready(gemma2_rmsnorm(x1, w1, eps=1e-6))
    r1 = _reference(x1, w1, eps=1e-6)
    assert o1.shape == x1.shape and o1.dtype == x1.dtype
    d1 = jnp.max(jnp.abs(o1.astype(jnp.float32) - r1.astype(jnp.float32)))
    assert float(d1) <= 1e-2, f"case1 max abs diff too large: {d1}"

    # Case 2: f32, explicit row_tile that does NOT divide the row count
    # (384 rows, tile 80 -> 5 steps, partial last block via the cdiv grid).
    x2 = jax.random.normal(k3, (4, 96, 384), dtype=jnp.float32)
    w2 = 0.05 * jax.random.normal(k4, (384,), dtype=jnp.float32)
    o2 = jax.block_until_ready(gemma2_rmsnorm(x2, w2, eps=1e-6, row_tile=80))
    r2 = _reference(x2, w2, eps=1e-6)
    assert o2.shape == x2.shape and o2.dtype == x2.dtype
    d2 = jnp.max(jnp.abs(o2 - r2))
    assert float(d2) <= 1e-4, f"case2 max abs diff too large: {d2}"

    # Case 3: f32 with auto-picked tile and a ragged row count (597 rows),
    # exercising the partial-block masking on the auto path.
    x3 = jax.random.normal(k5, (3, 199, 256), dtype=jnp.float32)
    w3 = 0.02 * jax.random.normal(k6, (256,), dtype=jnp.float32)
    o3 = jax.block_until_ready(gemma2_rmsnorm(x3, w3, eps=1e-6))
    r3 = _reference(x3, w3, eps=1e-6)
    assert o3.shape == x3.shape and o3.dtype == x3.dtype
    d3 = jnp.max(jnp.abs(o3 - r3))
    assert float(d3) <= 1e-4, f"case3 max abs diff too large: {d3}"

    print("KERNEL_OK")
</pallas_src>

<mosaic_0001>
module attributes {stable_mosaic.version = 11 : i64} {
  func.func @_rmsnorm_kernel(%arg0: i32, %arg1: memref<80x384xf32, #tpu.memory_space<vmem>>, %arg2: memref<1x384xf32, #tpu.memory_space<vmem>>, %arg3: memref<80x384xf32, #tpu.memory_space<vmem>>) attributes {dimension_semantics = [#tpu.dimension_semantics<parallel>], iteration_bounds = array<i64: 5>, scalar_prefetch = 0 : i64, scratch_operands = 0 : i64, tpu.core_type = #tpu.core_type<tc>, window_params = [{transform_indices = @transform_0, window_bounds = array<i64: 80, 384>}, {pipeline_mode = #tpu.pipeline_mode<synchronous>, transform_indices = @transform_1, window_bounds = array<i64: 1, 384>}, {transform_indices = @transform_2, window_bounds = array<i64: 80, 384>}]} {
    %c0 = arith.constant 0 : index
    %c0_0 = arith.constant 0 : index
    %0 = vector.load %arg1[%c0, %c0_0] : memref<80x384xf32, #tpu.memory_space<vmem>>, vector<80x384xf32>
    %1 = arith.mulf %0, %0 : vector<80x384xf32>
    %cst = arith.constant dense<0.000000e+00> : vector<80xf32>
    %2 = vector.multi_reduction <add>, %1, %cst [1] : vector<80x384xf32> to vector<80xf32>
    %3 = vector.shape_cast %2 : vector<80xf32> to vector<80x1xf32>
    %cst_1 = arith.constant 0.00260416674 : f32
    %4 = vector.broadcast %cst_1 : f32 to vector<80x1xf32>
    %5 = arith.mulf %3, %4 : vector<80x1xf32>
    %cst_2 = arith.constant 9.99999997E-7 : f32
    %6 = vector.broadcast %cst_2 : f32 to vector<80x1xf32>
    %7 = arith.addf %5, %6 : vector<80x1xf32>
    %8 = math.rsqrt %7 : vector<80x1xf32>
    %9 = vector.broadcast %8 : vector<80x1xf32> to vector<80x384xf32>
    %10 = arith.mulf %0, %9 : vector<80x384xf32>
    %c0_3 = arith.constant 0 : index
    %c0_4 = arith.constant 0 : index
    %11 = vector.load %arg2[%c0_3, %c0_4] : memref<1x384xf32, #tpu.memory_space<vmem>>, vector<1x384xf32>
    %12 = vector.broadcast %11 : vector<1x384xf32> to vector<80x384xf32>
    %13 = arith.mulf %10, %12 : vector<80x384xf32>
    %c0_5 = arith.constant 0 : index
    %c0_6 = arith.constant 0 : index
    %14 = vector.load %arg3[%c0_5, %c0_6] : memref<80x384xf32, #tpu.memory_space<vmem>>, vector<80x384xf32>
    tpu.vector_store %arg3[%c0_5, %c0_6], %13 {strides = array<i32>} : memref<80x384xf32, #tpu.memory_space<vmem>>, vector<80x384xf32>,
    return
  }
  func.func @transform_0(%arg0: i32) -> (i32, i32) {
    %c0_i32 = arith.constant 0 : i32
    %c0_i32_0 = arith.constant 0 : i32
    return %arg0, %c0_i32 : i32, i32
  }
  func.func @transform_1(%arg0: i32) -> (i32, i32) {
    %c0_i32 = arith.constant 0 : i32
    %c0_i32_0 = arith.constant 0 : i32
    %c0_i32_1 = arith.constant 0 : i32
    return %c0_i32, %c0_i32_0 : i32, i32
  }
  func.func @transform_2(%arg0: i32) -> (i32, i32) {
    %c0_i32 = arith.constant 0 : i32
    %c0_i32_0 = arith.constant 0 : i32
    return %arg0, %c0_i32 : i32, i32
  }
}

</mosaic_0001>

<llo_original>
// kernel: tpu_custom_call.1
$region0: #{tpu_custom_call.1}
  #allocation0 [shape = 'u32[]', space=smem, size = 0x4, offset = 0x4, fixed_abs, tag = 'smem constant byte address 0x4 - core index']
  #allocation1 [shape = 'u32[144,128]{1,0:T(1,128)}', space=vmem, size = 0x12000, scoped, tag = 'internal scratch']
  %s0 = inlined_call_operand.hbm [shape: f32[384,384], index: 0, kind: input, shape index: {}]
  %s1 = inlined_call_operand.hbm [shape: f32[1,384], index: 1, kind: input, shape index: {}]
  %s2 = inlined_call_operand.hbm [shape: f32[384,384], index: 2, kind: output, shape index: {}]
  %s3 = sld [smem:[#allocation0]]
  $region49: #{tpu_custom_call.1} parent=0
    _
  %s5 = ssub.s32 1, %s3
  %s6 = scalar_select 0, %s5, %s3
  $region1: #{tpu_custom_call.1} parent=0
    #allocation2 [shape = 'u8[245760]{0}', space=vmem, size = 0x3c000, scoped, tag = 'input window, operand 0']
    #allocation3 [shape = 's32[2]{0}', space=sflag, size = 0x8, scoped, tag = 'scoped memory for tpu_custom_call.1']
    #allocation4 [shape = 's32[2]{0}', space=sflag, size = 0x8, scoped, tag = 'scoped memory for tpu_custom_call.1']
    #allocation5 [shape = 'u8[1536]{0}', space=vmem, size = 0x800, scoped, tag = 'input window, operand 1, single buffered']
    #allocation6 [shape = 's32[1]{0}', space=sflag, size = 0x4, scoped, tag = 'scoped memory for tpu_custom_call.1']
    #allocation7 [shape = 'u8[245760]{0}', space=vmem, size = 0x3c000, scoped, tag = 'output window, operand 0']
    %7 = vsyncpa [#allocation3], 0
    %s8 = scalar_lea.sflag [#allocation3], 1
    %9 = vsyncpa %s8, 0
    %10 = vsyncpa [#allocation6], 0
    %11 = vsyncpa [#allocation4], 0
    %s12 = scalar_lea.sflag [#allocation4], 1
    %13 = vsyncpa %s12, 0
    loop: start=0, step=1, limit=7
    $region2: #{tpu_custom_call.1} parent=1 // loop_pre_header
      _
    $region3: #{tpu_custom_call.1} parent=1 // loop_header
      %s15 = sphi 0, %s19
      %p16 = scmp.ge.s32.totalorder %s15, 7
      %s25 = sphi 0, %s27
      %s28 = sphi 0, %s25
      %s29 = sphi 0, %s28
      %s45 = sphi 0, %s29
      %s49 = sphi 0, %s49
      %s51 = sphi 0, %s49
      %s52 = sphi 0, %s51
      %s66 = sphi 0, %s52
      %s72 = sphi 0, %s74
      %s75 = sphi 0, %s72
      %s76 = sphi 0, %s75
      %s92 = sphi 0, %s76
    $region4: #{tpu_custom_call.1} parent=1 // loop_header_branch
      %18 = sbr.rel (%p16) target = $region8
    $region5: #{tpu_custom_call.1} parent=1 // loop_body
      %s20 = ssub.s32 %s15, 1
      %s21 = ssub.s32 %s15, 2
      %s22 = sadd.s32 %s15, 1
      %s23 = ssub.s32 %s15, %s22
      %p24 = scmp.eq.s32.totalorder %s23, 0
      %s26 = sadd.s32 %s25, 1
      %s27 = scalar_select %p24, %s25, %s26
      %p30 = pneg %p24
      %p31 = scmp.eq.s32.totalorder %s15, 4
      %p32 = por %p30, %p31
      %p33 = scmp.ne.s32.totalorder %s25, %s28
      %p34 = scmp.eq.s32.totalorder %s15, 0
      %p35 = por %p33, %p34
      %p36 = scmp.ne.s32.totalorder %s25, %s28
      %p37 = scmp.eq.s32.totalorder %s20, 4
      %p38 = por %p36, %p37
      %p39 = scmp.ne.s32.totalorder %s28, %s29
      %p40 = scmp.eq.s32.totalorder %s20, 0
      %p41 = por %p39, %p40
      %p42 = scmp.ne.s32.totalorder %s28, %s29
      %p43 = scmp.eq.s32.totalorder %s21, 4
      %p44 = por %p42, %p43
      %p46 = scmp.ne.s32.totalorder %s29, %s45
      %p47 = scmp.eq.s32.totalorder %s21, 0
      %p48 = por %p46, %p47
      %s50 = sadd.s32 %s49, 1
      %p53 = scmp.eq.s32.totalorder %s15, 4
      %p54 = scmp.ne.s32.totalorder %s49, %s51
      %p55 = scmp.eq.s32.totalorder %s15, 0
      %p56 = por %p54, %p55
      %p57 = scmp.ne.s32.totalorder %s49, %s51
      %p58 = scmp.eq.s32.totalorder %s20, 4
      %p59 = por %p57, %p58
      %p60 = scmp.ne.s32.totalorder %s51, %s52
      %p61 = scmp.eq.s32.totalorder %s20, 0
      %p62 = por %p60, %p61
      %p63 = scmp.ne.s32.totalorder %s51, %s52
      %p64 = scmp.eq.s32.totalorder %s21, 4
      %p65 = por %p63, %p64
      %p67 = scmp.ne.s32.totalorder %s52, %s66
      %p68 = scmp.eq.s32.totalorder %s21, 0
      %p69 = por %p67, %p68
      %s70 = ssub.s32 %s15, %s22
      %p71 = scmp.eq.s32.totalorder %s70, 0
      %s73 = sadd.s32 %s72, 1
      %s74 = scalar_select %p71, %s72, %s73
      %p77 = pneg %p71
      %p78 = scmp.eq.s32.totalorder %s15, 4
      %p79 = por %p77, %p78
      %p80 = scmp.ne.s32.totalorder %s72, %s75
      %p81 = scmp.eq.s32.totalorder %s15, 0
      %p82 = por %p80, %p81
      %p83 = scmp.ne.s32.totalorder %s72, %s75
      %p84 = scmp.eq.s32.totalorder %s20, 4
      %p85 = por %p83, %p84
      %p86 = scmp.ne.s32.totalorder %s75, %s76
      %p87 = scmp.eq.s32.totalorder %s20, 0
      %p88 = por %p86, %p87
      %p89 = scmp.ne.s32.totalorder %s75, %s76
      %p90 = scmp.eq.s32.totalorder %s21, 4
      %p91 = por %p89, %p90
      %p93 = scmp.ne.s32.totalorder %s76, %s92
      %p94 = scmp.eq.s32.totalorder %s21, 0
      %p95 = por %p93, %p94
      %p96 = scmp.le.s32.totalorder 1, %s15
      %p97 = scmp.lt.s32.totalorder %s15, 6
      %p98 = pnand %p96, %p97
      %p99 = pneg %p98
      // Predicated region
      $region9: #{tpu_custom_call.1} parent=5 // pred_check
        _
      $region10: #{tpu_custom_call.1} parent=5 // pred_check_branch
        %101 = sbr.rel (%p98) target = $region12
      $region11: #{tpu_custom_call.1} parent=5 // pred_region
        %s102 = ssub.s32 %s15, 1
        // Predicated region
        $region13: #{tpu_custom_call.1} parent=11 // pred_check
          %p103 = pneg %p62
        $region14: #{tpu_custom_call.1} parent=11 // pred_check_branch
          %105 = sbr.rel (%p103) target = $region16
        $region15: #{tpu_custom_call.1} parent=11 // pred_region
          %s107 = ssub.s32 48, 48
          %108 = vsyncadd [#allocation6], %s107
          %s110 = sshll.u32 [#allocation5], 4
          %s111 = int_to_ptr.vmem [resolvable:$true] %s110
          %113 = dma.hbm_to_vmem [thread:$0]  %s1, 48, %s111, [#allocation6]
        $region16: #{tpu_custom_call.1} parent=11 // pred_fallthru
          _
      $region12: #{tpu_custom_call.1} parent=5 // pred_fallthru
        _
      %p114 = scmp.lt.s32.totalorder %s15, 5
      // Predicated region
      $region17: #{tpu_custom_call.1} parent=5 // pred_check
        %p115 = pneg %p114
      $region18: #{tpu_custom_call.1} parent=5 // pred_check_branch
        %117 = sbr.rel (%p115) target = $region20
      $region19: #{tpu_custom_call.1} parent=5 // pred_region
        // Predicated region
        $region21: #{tpu_custom_call.1} parent=19 // pred_check
          %p118 = pneg %p35
        $region22: #{tpu_custom_call.1} parent=19 // pred_check_branch
          %120 = sbr.rel (%p118) target = $region24
        $region23: #{tpu_custom_call.1} parent=19 // pred_region
          %s121 = sand.u32 %s25, 1
          %s122 = scalar_lea.sflag [#allocation3], %s121
          %s123 = sand.u32 %s25, 1
          %s124 = smul.addr %s123, 240
          %s125 = scalar_lea.vmem [#allocation2], %s124
          %s126 = smul.u32 10, %s15
          %s127 = ssub.s32 48, %s126
          %p128 = scmp.lt.s32.totalorder %s127, 10
          %s129 = scalar_select %p128, %s127, 10
          %s130 = smul.u32 128, %s129
          %s131 = smul.u32 %s130, 3
          %s133 = ssub.s32 3840, %s131
          %134 = vsyncadd %s122, %s133
          %p135 = scmp.ne.s32.totalorder 0, %s131
          %s136 = smul.addr %s126, 3
          %s137 = smul.addr %s136, 128
          %s138 = scalar_lea.hbm %s0, %s137
          %s139 = smul.u32 24, %s129
          %s140 = sshll.u32 %s125, 4
          %s141 = int_to_ptr.vmem [resolvable:$true] %s140
          %s142 = sshll.u32 %s139, 4
          %146 = dma.hbm_to_vmem [thread:$0]  (%p135), %s138, %s142, %s141, %s122, 384, 384, 24
        $region24: #{tpu_custom_call.1} parent=19 // pred_fallthru
          _
      $region20: #{tpu_custom_call.1} parent=5 // pred_fallthru
        _
      %p147 = scmp.le.s32.totalorder 1, %s15
      %p148 = scmp.lt.s32.totalorder %s15, 6
      %p149 = pnand %p147, %p148
      %p150 = pneg %p149
      // Predicated region
      $region25: #{tpu_custom_call.1} parent=5 // pred_check
        _
      $region26: #{tpu_custom_call.1} parent=5 // pred_check_branch
        %152 = sbr.rel (%p149) target = $region28
      $region27: #{tpu_custom_call.1} parent=5 // pred_region
        %s153 = ssub.s32 %s15, 1
        %s154 = sand.u32 %s28, 1
        %s155 = scalar_lea.sflag [#allocation3], %s154
        %s156 = sand.u32 %s28, 1
        %s157 = smul.addr %s156, 240
        %s158 = scalar_lea.vmem [#allocation2], %s157
        // Predicated region
        $region29: #{tpu_custom_call.1} parent=27 // pred_check
          %p159 = pneg %p41
        $region30: #{tpu_custom_call.1} parent=27 // pred_check_branch
          %161 = sbr.rel (%p159) target = $region32
        $region31: #{tpu_custom_call.1} parent=27 // pred_region
          %162 = dma.done %s155, 3840
        $region32: #{tpu_custom_call.1} parent=27 // pred_fallthru
          _
        // Predicated region
        $region33: #{tpu_custom_call.1} parent=27 // pred_check
          %p163 = pneg %p62
        $region34: #{tpu_custom_call.1} parent=27 // pred_check_branch
          %165 = sbr.rel (%p163) target = $region36
        $region35: #{tpu_custom_call.1} parent=27 // pred_region
          %166 = dma.done [#allocation6], 48
        $region36: #{tpu_custom_call.1} parent=27 // pred_fallthru
          _
        %s167 = sand.u32 %s28, 1
        %s168 = scalar_lea.sflag [#allocation3], %s167
        %s169 = sand.u32 %s28, 1
        %s170 = smul.addr %s169, 240
        %s171 = scalar_lea.vmem [#allocation2], %s170
        %p172 = pneg %p41
        %p173 = pneg %p38
        %p174 = pneg %p62
        %p175 = pneg %p59
        %p176 = pneg %p88
        %p177 = pneg %p85
        %s178 = sand.u32 %s75, 1
        %s179 = scalar_lea.sflag [#allocation4], %s178
        %s180 = sand.u32 %s75, 1
        %s181 = smul.addr %s180, 240
        %s182 = scalar_lea.vmem [#allocation7], %s181
        %s183 = smul.u32 10, %s20
        %s184 = ssub.s32 48, %s183
        %p185 = scmp.lt.s32.totalorder %s184, 10
        %s186 = scalar_select %p185, %s184, 10
        %s187 = smul.u32 128, %s186
        %s188 = smul.u32 %s187, 3
        %s189 = smul.u32 10, %s20
        %s190 = ssub.s32 48, %s189
        %p191 = scmp.lt.s32.totalorder %s190, 10
        %s192 = scalar_select %p191, %s190, 10
        %s193 = smul.u32 128, %s192
        %s194 = smul.u32 %s193, 3
        %v195 = vld [vmem:[%s158] sm:$0xff]
        %v196 = vld [vmem:[%s158 + $0x8] sm:$0xff]
        %v197 = vld [vmem:[%s158 + $0x10] sm:$0xff]
        %v198 = vld [vmem:[%s158 + $0x18] sm:$0xff]
        %v199 = vld [vmem:[%s158 + $0x20] sm:$0xff]
        %v200 = vld [vmem:[%s158 + $0x28] sm:$0xff]
        %v201 = vld [vmem:[%s158 + $0x30] sm:$0xff]
        %v202 = vld [vmem:[%s158 + $0x38] sm:$0xff]
        %v203 = vld [vmem:[%s158 + $0x40] sm:$0xff]
        %v204 = vld [vmem:[%s158 + $0x48] sm:$0xff]
        %v205 = vld [vmem:[%s158 + $0x50] sm:$0xff]
        %v206 = vld [vmem:[%s158 + $0x58] sm:$0xff]
        %v207 = vld [vmem:[%s158 + $0x60] sm:$0xff]
        %v208 = vld [vmem:[%s158 + $0x68] sm:$0xff]
        %v209 = vld [vmem:[%s158 + $0x70] sm:$0xff]
        %v210 = vld [vmem:[%s158 + $0x78] sm:$0xff]
        %v211 = vld [vmem:[%s158 + $0x80] sm:$0xff]
        %v212 = vld [vmem:[%s158 + $0x88] sm:$0xff]
        %v213 = vld [vmem:[%s158 + $0x90] sm:$0xff]
        %v214 = vld [vmem:[%s158 + $0x98] sm:$0xff]
        %v215 = vld [vmem:[%s158 + $0xa0] sm:$0xff]
        %v216 = vld [vmem:[%s158 + $0xa8] sm:$0xff]
        %v217 = vld [vmem:[%s158 + $0xb0] sm:$0xff]
        %v218 = vld [vmem:[%s158 + $0xb8] sm:$0xff]
        %v219 = vld [vmem:[%s158 + $0xc0] sm:$0xff]
        %v220 = vld [vmem:[%s158 + $0xc8] sm:$0xff]
        %v221 = vld [vmem:[%s158 + $0xd0] sm:$0xff]
        %v222 = vld [vmem:[%s158 + $0xd8] sm:$0xff]
        %v223 = vld [vmem:[%s158 + $0xe0] sm:$0xff]
        %v224 = vld [vmem:[%s158 + $0xe8] sm:$0xff]
        %v225 = vmul.f32 %v195, %v195
        %v226 = vmul.f32 %v196, %v196
        %v227 = vmul.f32 %v197, %v197
        %v228 = vmul.f32 %v198, %v198
        %v229 = vmul.f32 %v199, %v199
        %v230 = vmul.f32 %v200, %v200
        %v231 = vmul.f32 %v201, %v201
        %v232 = vmul.f32 %v202, %v202
        %v233 = vmul.f32 %v203, %v203
        %v234 = vmul.f32 %v204, %v204
        %v235 = vmul.f32 %v205, %v205
        %v236 = vmul.f32 %v206, %v206
        %v237 = vmul.f32 %v207, %v207
        %v238 = vmul.f32 %v208, %v208
        %v239 = vmul.f32 %v209, %v209
        %v240 = vmul.f32 %v210, %v210
        %v241 = vmul.f32 %v211, %v211
        %v242 = vmul.f32 %v212, %v212
        %v243 = vmul.f32 %v213, %v213
        %v244 = vmul.f32 %v214, %v214
        %v245 = vmul.f32 %v215, %v215
        %v246 = vmul.f32 %v216, %v216
        %v247 = vmul.f32 %v217, %v217
        %v248 = vmul.f32 %v218, %v218
        %v249 = vmul.f32 %v219, %v219
        %v250 = vmul.f32 %v220, %v220
        %v251 = vmul.f32 %v221, %v221
        %v252 = vmul.f32 %v222, %v222
        %v253 = vmul.f32 %v223, %v223
        %v254 = vmul.f32 %v224, %v224
        %v255 = vadd.f32 %v225, %v226
        %v256 = vadd.f32 %v255, %v227
        %257 = vadd.xlane.f32.xlu0 %v256
        %v258 = vpop.xlane.xlu0 %257
        %v259 = vadd.f32 %v228, %v229
        %v260 = vadd.f32 %v259, %v230
        %261 = vadd.xlane.f32.xlu0 %v260
        %v262 = vpop.xlane.xlu0 %261
        %v263 = vadd.f32 %v231, %v232
        %v264 = vadd.f32 %v263, %v233
        %265 = vadd.xlane.f32.xlu0 %v264
        %v266 = vpop.xlane.xlu0 %265
        %v267 = vadd.f32 %v234, %v235
        %v268 = vadd.f32 %v267, %v236
        %269 = vadd.xlane.f32.xlu0 %v268
        %v270 = vpop.xlane.xlu0 %269
        %v271 = vadd.f32 %v237, %v238
        %v272 = vadd.f32 %v271, %v239
        %273 = vadd.xlane.f32.xlu0 %v272
        %v274 = vpop.xlane.xlu0 %273
        %v275 = vadd.f32 %v240, %v241
        %v276 = vadd.f32 %v275, %v242
        %277 = vadd.xlane.f32.xlu0 %v276
        %v278 = vpop.xlane.xlu0 %277
        %v279 = vadd.f32 %v243, %v244
        %v280 = vadd.f32 %v279, %v245
        %281 = vadd.xlane.f32.xlu0 %v280
        %v282 = vpop.xlane.xlu0 %281
        %v283 = vadd.f32 %v246, %v247
        %v284 = vadd.f32 %v283, %v248
        %285 = vadd.xlane.f32.xlu0 %v284
        %v286 = vpop.xlane.xlu0 %285
        %v287 = vadd.f32 %v249, %v250
        %v288 = vadd.f32 %v287, %v251
        %289 = vadd.xlane.f32.xlu0 %v288
        %v290 = vpop.xlane.xlu0 %289
        %v291 = vadd.f32 %v252, %v253
        %v292 = vadd.f32 %v291, %v254
        %293 = vadd.xlane.f32.xlu0 %v292
        %v294 = vpop.xlane.xlu0 %293
        %v295 = vmul.f32 %v258, 0.0026041667
        %v296 = vmul.f32 %v262, 0.0026041667
        %v297 = vmul.f32 %v266, 0.0026041667
        %v298 = vmul.f32 %v270, 0.0026041667
        %v299 = vmul.f32 %v274, 0.0026041667
        %v300 = vmul.f32 %v278, 0.0026041667
        %v301 = vmul.f32 %v282, 0.0026041667
        %v302 = vmul.f32 %v286, 0.0026041667
        %v303 = vmul.f32 %v290, 0.0026041667
        %v304 = vmul.f32 %v294, 0.0026041667
        %v305 = vadd.f32 %v295, 1e-06
        %v306 = vadd.f32 %v296, 1e-06
        %v307 = vadd.f32 %v297, 1e-06
        %v308 = vadd.f32 %v298, 1e-06
        %v309 = vadd.f32 %v299, 1e-06
        %v310 = vadd.f32 %v300, 1e-06
        %v311 = vadd.f32 %v301, 1e-06
        %v312 = vadd.f32 %v302, 1e-06
        %v313 = vadd.f32 %v303, 1e-06
        %v314 = vadd.f32 %v304, 1e-06
        %v315 = vrsqrt.pop %v305
        %v316 = vrsqrt.pop %v306
        %v317 = vrsqrt.pop %v307
        %v318 = vrsqrt.pop %v308
        %v319 = vrsqrt.pop %v309
        %v320 = vrsqrt.pop %v310
        %v321 = vrsqrt.pop %v311
        %v322 = vrsqrt.pop %v312
        %v323 = vrsqrt.pop %v313
        %v324 = vrsqrt.pop %v314
        %v325 = vmul.f32 %v195, %v315
        %v326 = vmul.f32 %v196, %v315
        %v327 = vmul.f32 %v197, %v315
        %v328 = vmul.f32 %v198, %v316
        %v329 = vmul.f32 %v199, %v316
        %v330 = vmul.f32 %v200, %v316
        %v331 = vmul.f32 %v201, %v317
        %v332 = vmul.f32 %v202, %v317
        %v333 = vmul.f32 %v203, %v317
        %v334 = vmul.f32 %v204, %v318
        %v335 = vmul.f32 %v205, %v318
        %v336 = vmul.f32 %v206, %v318
        %v337 = vmul.f32 %v207, %v319
        %v338 = vmul.f32 %v208, %v319
        %v339 = vmul.f32 %v209, %v319
        %v340 = vmul.f32 %v210, %v320
        %v341 = vmul.f32 %v211, %v320
        %v342 = vmul.f32 %v212, %v320
        %v343 = vmul.f32 %v213, %v321
        %v344 = vmul.f32 %v214, %v321
        %v345 = vmul.f32 %v215, %v321
        %v346 = vmul.f32 %v216, %v322
        %v347 = vmul.f32 %v217, %v322
        %v348 = vmul.f32 %v218, %v322
        %v349 = vmul.f32 %v219, %v323
        %v350 = vmul.f32 %v220, %v323
        %v351 = vmul.f32 %v221, %v323
        %v352 = vmul.f32 %v222, %v324
        %v353 = vmul.f32 %v223, %v324
        %v354 = vmul.f32 %v224, %v324
        %v355 = vld [vmem:[#allocation5] sm:$0x7]
        %v357 = vlaneseq
        %v358 = vshrl.u32 %v357, 7
        %v359 = vsub.s32 0, %v358
        %v360 = vrot.slane %v355, %v359
        %v361 = vlaneseq
        %v362 = vshrl.u32 %v361, 7
        %v363 = vsub.s32 1, %v362
        %v364 = vrot.slane %v355, %v363
        %v365 = vlaneseq
        %v366 = vshrl.u32 %v365, 7
        %v367 = vsub.s32 2, %v366
        %v368 = vrot.slane %v355, %v367
        %v372 = vmul.f32 %v325, %v360
        %v373 = vmul.f32 %v326, %v364
        %v374 = vmul.f32 %v327, %v368
        %v375 = vmul.f32 %v328, %v360
        %v376 = vmul.f32 %v329, %v364
        %v377 = vmul.f32 %v330, %v368
        %v378 = vmul.f32 %v331, %v360
        %v379 = vmul.f32 %v332, %v364
        %v380 = vmul.f32 %v333, %v368
        %v381 = vmul.f32 %v334, %v360
        %v382 = vmul.f32 %v335, %v364
        %v383 = vmul.f32 %v336, %v368
        %v384 = vmul.f32 %v337, %v360
        %v385 = vmul.f32 %v338, %v364
        %v386 = vmul.f32 %v339, %v368
        %v387 = vmul.f32 %v340, %v360
        %v388 = vmul.f32 %v341, %v364
        %v389 = vmul.f32 %v342, %v368
        %v390 = vmul.f32 %v343, %v360
        %v391 = vmul.f32 %v344, %v364
        %v392 = vmul.f32 %v345, %v368
        %v393 = vmul.f32 %v346, %v360
        %v394 = vmul.f32 %v347, %v364
        %v395 = vmul.f32 %v348, %v368
        %v396 = vmul.f32 %v349, %v360
        %v397 = vmul.f32 %v350, %v364
        %v398 = vmul.f32 %v351, %v368
        %v399 = vmul.f32 %v352, %v360
        %v400 = vmul.f32 %v353, %v364
        %v401 = vmul.f32 %v354, %v368
        %402 = vst [vmem:[%s182] sm:$0xff] %v372
        %403 = vst [vmem:[%s182 + $0x8] sm:$0xff] %v373
        %404 = vst [vmem:[%s182 + $0x10] sm:$0xff] %v374
        %405 = vst [vmem:[%s182 + $0x18] sm:$0xff] %v375
        %406 = vst [vmem:[%s182 + $0x20] sm:$0xff] %v376
        %407 = vst [vmem:[%s182 + $0x28] sm:$0xff] %v377
        %408 = vst [vmem:[%s182 + $0x30] sm:$0xff] %v378
        %409 = vst [vmem:[%s182 + $0x38] sm:$0xff] %v379
        %410 = vst [vmem:[%s182 + $0x40] sm:$0xff] %v380
        %411 = vst [vmem:[%s182 + $0x48] sm:$0xff] %v381
        %412 = vst [vmem:[%s182 + $0x50] sm:$0xff] %v382
        %413 = vst [vmem:[%s182 + $0x58] sm:$0xff] %v383
        %414 = vst [vmem:[%s182 + $0x60] sm:$0xff] %v384
        %415 = vst [vmem:[%s182 + $0x68] sm:$0xff] %v385
        %416 = vst [vmem:[%s182 + $0x70] sm:$0xff] %v386
        %417 = vst [vmem:[%s182 + $0x78] sm:$0xff] %v387
        %418 = vst [vmem:[%s182 + $0x80] sm:$0xff] %v388
        %419 = vst [vmem:[%s182 + $0x88] sm:$0xff] %v389
        %420 = vst [vmem:[%s182 + $0x90] sm:$0xff] %v390
        %421 = vst [vmem:[%s182 + $0x98] sm:$0xff] %v391
        %422 = vst [vmem:[%s182 + $0xa0] sm:$0xff] %v392
        %423 = vst [vmem:[%s182 + $0xa8] sm:$0xff] %v393
        %424 = vst [vmem:[%s182 + $0xb0] sm:$0xff] %v394
        %425 = vst [vmem:[%s182 + $0xb8] sm:$0xff] %v395
        %426 = vst [vmem:[%s182 + $0xc0] sm:$0xff] %v396
        %427 = vst [vmem:[%s182 + $0xc8] sm:$0xff] %v397
        %428 = vst [vmem:[%s182 + $0xd0] sm:$0xff] %v398
        %429 = vst [vmem:[%s182 + $0xd8] sm:$0xff] %v399
        %430 = vst [vmem:[%s182 + $0xe0] sm:$0xff] %v400
        %431 = vst [vmem:[%s182 + $0xe8] sm:$0xff] %v401
        %s432 = sand.u32 %s75, 1
        %s433 = scalar_lea.sflag [#allocation4], %s432
        %s434 = sand.u32 %s75, 1
        %s435 = smul.addr %s434, 240
        %s436 = scalar_lea.vmem [#allocation7], %s435
        // Predicated region
        $region37: #{tpu_custom_call.1} parent=27 // pred_check
          %p437 = pneg %p85
        $region38: #{tpu_custom_call.1} parent=27 // pred_check_branch
          %439 = sbr.rel (%p437) target = $region40
        $region39: #{tpu_custom_call.1} parent=27 // pred_region
          %s440 = smul.u32 10, %s20
          %s441 = ssub.s32 48, %s440
          %p442 = scmp.lt.s32.totalorder %s441, 10
          %s443 = scalar_select %p442, %s441, 10
          %s444 = smul.u32 128, %s443
          %s445 = smul.u32 %s444, 3
          %s447 = ssub.s32 3840, %s445
          %448 = vsyncadd %s433, %s447
          %p449 = scmp.ne.s32.totalorder 0, %s445
          %s450 = smul.addr %s440, 3
          %s451 = smul.addr %s450, 128
          %s452 = scalar_lea.hbm %s2, %s451
          %s453 = smul.u32 24, %s443
          %s454 = sshll.u32 %s436, 4
          %s455 = int_to_ptr.vmem [resolvable:$true] %s454
          %s456 = sshll.u32 %s453, 4
          %460 = dma.vmem_to_hbm [thread:$0]  (%p449), %s455, %s456, %s452, %s433, 384, 384, 24
        $region40: #{tpu_custom_call.1} parent=27 // pred_fallthru
          _
      $region28: #{tpu_custom_call.1} parent=5 // pred_fallthru
        _
      %p461 = scmp.le.s32.totalorder 2, %s15
      // Predicated region
      $region41: #{tpu_custom_call.1} parent=5 // pred_check
        %p462 = pneg %p461
      $region42: #{tpu_custom_call.1} parent=5 // pred_check_branch
        %464 = sbr.rel (%p462) target = $region44
      $region43: #{tpu_custom_call.1} parent=5 // pred_region
        %s465 = ssub.s32 %s15, 2
        // Predicated region
        $region45: #{tpu_custom_call.1} parent=43 // pred_check
          %p466 = pneg %p91
        $region46: #{tpu_custom_call.1} parent=43 // pred_check_branch
          %468 = sbr.rel (%p466) target = $region48
        $region47: #{tpu_custom_call.1} parent=43 // pred_region
          %s469 = sand.u32 %s76, 1
          %s470 = scalar_lea.sflag [#allocation4], %s469
          %s471 = sand.u32 %s76, 1
          %s472 = smul.addr %s471, 240
          %s473 = scalar_lea.vmem [#allocation7], %s472
          %474 = dma.done %s470, 3840
        $region48: #{tpu_custom_call.1} parent=43 // pred_fallthru
          _
      $region44: #{tpu_custom_call.1} parent=5 // pred_fallthru
        _
    $region6: #{tpu_custom_call.1} parent=1 // loop_footer
      %s19 = sadd.s32 1, %s15
    $region7: #{tpu_custom_call.1} parent=1 // loop_footer_branch
      %14 = sbr.rel target = $region3
    $region8: #{tpu_custom_call.1} parent=1 // loop_exit
      _
    %475 = vsyncpa [#allocation3], 1
    %s476 = scalar_lea.sflag [#allocation3], 1
    %477 = vsyncpa %s476, 1
    %478 = vsyncpa [#allocation6], 1
    %479 = vsyncpa [#allocation4], 1
    %s480 = scalar_lea.sflag [#allocation4], 1
    %481 = vsyncpa %s480, 1

</llo_original>
